<compile_context>
chip_gen: v7x
topology: tpu7x:2x2x1
jax: 0.10.0
libtpu: 0.0.40
codegen_flags: <defaults>
</compile_context>

<pallas_src>
import math

import jax
import jax.numpy as jnp
from jax.experimental import pallas as pl
from jax.experimental.pallas import tpu as pltpu

_LANES = 128
_BLOCK_ROWS = 2048          # (2048, 128) f32 = 1 MiB per input block
_NUM_CORE_SPLITS = 2        # v7x has 2 TensorCores; serial (cheap) on v5e/v6e
_XLA_FALLBACK_ELEMS = 1024  # below this a pallas_call launch costs more than it saves
_VMEM_LIMIT_BYTES = 32 << 20


# ---------------------------------------------------------------------------
# Slab view: flatten to a lane-dense (rows, 128) layout (zero-copy when possible)
# ---------------------------------------------------------------------------
def _slab(x):
    """Return (slab_2d, n): a (rows, 128) view of x plus the true element count.

    Pure (free) reshape when x.size is a multiple of 128; otherwise a small pad
    copy is made.  Any padded / out-of-range elements are masked in-kernel.
    """
    flat = x.reshape(-1)
    n = flat.shape[0]
    rows = pl.cdiv(n, _LANES)
    pad = rows * _LANES - n
    if pad:
        # Rare (size % 128 != 0).  Pad value 1.0 is harmless for both reductions
        # and is masked out in-kernel anyway.
        flat = jnp.concatenate([flat, jnp.ones((pad,), dtype=flat.dtype)])
    return flat.reshape(rows, _LANES), n


# ---------------------------------------------------------------------------
# Generic blocked reduction:  sum( term_fn(blocks...) )  over all real elements
# ---------------------------------------------------------------------------
def _pallas_reduce(term_fn, slabs, n, block_rows):
    rows = slabs[0].shape[0]

    # Block row count: full array (any value) for small inputs, else a multiple of 8.
    br = min(block_rows, rows)
    if br < rows:
        br = max(8, (br // 8) * 8)
    total_blocks = pl.cdiv(rows, br)

    # Split blocks across TensorCores (v7x).  Only split when it is exact or the
    # waste from one duplicated (fully masked) block is negligible, so single-core
    # chips never pay a meaningful overhead.
    if total_blocks % _NUM_CORE_SPLITS == 0 or total_blocks >= 8 * _NUM_CORE_SPLITS:
        nsplit = _NUM_CORE_SPLITS
    else:
        nsplit = 1
    bpc = pl.cdiv(total_blocks, nsplit)          # blocks per split

    covered = nsplit * bpc * br * _LANES         # elements the grid will touch
    needs_mask = covered != n                    # static
    acc_rows = 8 if br % 8 == 0 else 1           # accumulator block height

    def kernel(*refs):
        in_refs, o_ref = refs[:-1], refs[-1]
        j = pl.program_id(1)

        @pl.when(j == 0)
        def _():
            o_ref[...] = jnp.zeros_like(o_ref)

        vals = [r[...].astype(jnp.float32) for r in in_refs]     # (br, 128)
        if needs_mask:
            b = pl.program_id(0) * bpc + j                       # logical block idx
            base = b * (br * _LANES)
            row = jax.lax.broadcasted_iota(jnp.int32, (br, _LANES), 0)
            lane = jax.lax.broadcasted_iota(jnp.int32, (br, _LANES), 1)
            mask = (base + row * _LANES + lane) < n
        else:
            mask = None

        terms = term_fn(vals, mask)                              # (br, 128) f32
        if acc_rows == 8:
            # Pure-VPU elementwise fold into an (8,128) accumulator block.
            o_ref[...] += terms.reshape(-1, 8, _LANES).sum(axis=0, keepdims=True)
        else:
            # Odd small block (br not a multiple of 8): (1,128) column sums.
            o_ref[...] += terms.sum(axis=0, keepdims=True)[None]

    # Clamp keeps the DMA in-bounds; logical overrun blocks are fully masked above.
    in_spec = pl.BlockSpec(
        (br, _LANES),
        lambda c, j: (jnp.minimum(c * bpc + j, total_blocks - 1), 0))

    partials = pl.pallas_call(
        kernel,
        out_shape=jax.ShapeDtypeStruct((nsplit, acc_rows, _LANES), jnp.float32),
        grid_spec=pltpu.PrefetchScalarGridSpec(
            num_scalar_prefetch=0,
            grid=(nsplit, bpc),
            in_specs=[in_spec] * len(slabs),
            out_specs=pl.BlockSpec((1, acc_rows, _LANES), lambda c, j: (c, 0, 0)),
        ),
        compiler_params=pltpu.CompilerParams(
            dimension_semantics=("parallel", "arbitrary"),
            vmem_limit_bytes=_VMEM_LIMIT_BYTES),
    )(*slabs)

    # Tiny finalize (<= 2*8*128 values) in plain XLA.
    return jnp.sum(partials)


def _log_terms(vals, mask):
    (x,) = vals
    if mask is not None:
        x = jnp.where(mask, x, jnp.float32(1.0))    # log(1) = 0 contribution
    return jnp.log(x)


def _sq_err_terms(vals, mask):
    a, b = vals
    d = a - b
    if mask is not None:
        d = jnp.where(mask, d, jnp.float32(0.0))
    return d * d


# ---------------------------------------------------------------------------
# Public reductions
# ---------------------------------------------------------------------------
def pallas_sum_log(x, *, block_rows=_BLOCK_ROWS):
    """sum(log(x)) over all elements."""
    if x.size < _XLA_FALLBACK_ELEMS:
        # Tiny tensors (e.g. toy hyper-prior likelihoods): launch overhead would
        # dominate, let XLA fuse it.
        return jnp.sum(jnp.log(x.astype(jnp.float32)))
    slab, n = _slab(x)
    return _pallas_reduce(_log_terms, [slab], n, block_rows)


def pallas_sum_sq_err(a, b, *, block_rows=_BLOCK_ROWS):
    """sum((a-b)^2) over all elements."""
    a_slab, n = _slab(a)
    b_slab, _ = _slab(b)
    return _pallas_reduce(_sq_err_terms, [a_slab, b_slab], n, block_rows)


# ---------------------------------------------------------------------------
# RateDistortionLoss_p2 forward
# ---------------------------------------------------------------------------
def _rate_distortion_loss_p2(output, target, lmbda=0.01):
    N, _, H, W = target.shape
    num_pixels = N * H * W

    out = {}

    bpp = jnp.float32(0.0)
    for likelihoods in output['likelihoods'].values():
        bpp = bpp + pallas_sum_log(likelihoods) / (-math.log(2) * num_pixels)
    out['bpp_loss'] = bpp

    sse = pallas_sum_sq_err(output['x_hat_p2'], target)
    out['mse_loss'] = sse / jnp.float32(target.size)

    out['loss'] = lmbda * (255 ** 2) * out['mse_loss'] + out['bpp_loss']
    return out


# jit the whole loss so the separate reductions overlap and the epilogue fuses.
rate_distortion_loss_p2 = jax.jit(_rate_distortion_loss_p2,
                                  static_argnames=("lmbda",))


# ---------------------------------------------------------------------------
# Demo / correctness check
# ---------------------------------------------------------------------------
if __name__ == "__main__":
    key = jax.random.PRNGKey(0)
    k1, k2, k3, k4, k5 = jax.random.split(key, 5)

    # Image tensors: 2*3*18*18 = 1944 elements -> exercises the masked-tail path.
    N, C, H, W = 2, 3, 18, 18
    target = jax.random.normal(k1, (N, C, H, W), dtype=jnp.float32)
    x_hat = target + 0.05 * jax.random.normal(k2, (N, C, H, W), dtype=jnp.float32)

    # Likelihood tensors (strictly positive), chosen to cover all code paths:
    lik_y = jax.random.uniform(k3, (N, 32, 8, 8), dtype=jnp.float32,
                               minval=0.05, maxval=1.0)   # 4096: aligned Pallas path
    lik_w = jax.random.uniform(k4, (N, 5, 12, 12), dtype=jnp.float32,
                               minval=0.05, maxval=1.0)   # 1440: pad + mask path
    lik_z = jax.random.uniform(k5, (N, 8, 2, 2), dtype=jnp.float32,
                               minval=0.05, maxval=1.0)   # 64: tiny XLA fallback

    output = {'likelihoods': {'y': lik_y, 'w': lik_w, 'z': lik_z},
              'x_hat_p2': x_hat}

    res = rate_distortion_loss_p2(output, target, lmbda=0.01)
    jax.block_until_ready(res['loss'])

    # Pure-JAX reference.
    num_pixels = N * H * W
    ref_bpp = (jnp.sum(jnp.log(lik_y)) + jnp.sum(jnp.log(lik_w)) +
               jnp.sum(jnp.log(lik_z))) / (-math.log(2) * num_pixels)
    ref_mse = jnp.mean((x_hat - target) ** 2)
    ref_loss = 0.01 * 255 ** 2 * ref_mse + ref_bpp

    assert jnp.allclose(res['bpp_loss'], ref_bpp, rtol=1e-5, atol=1e-4)
    assert jnp.allclose(res['mse_loss'], ref_mse, rtol=1e-5, atol=1e-6)
    assert jnp.allclose(res['loss'], ref_loss, rtol=1e-5, atol=1e-4)

    # Extra coverage at a small block size: multi-block accumulation (j > 1),
    # 2-way core split, with and without tail masking.
    chk1 = pallas_sum_log(lik_y, block_rows=8)
    assert jnp.allclose(chk1, jnp.sum(jnp.log(lik_y)), rtol=1e-5, atol=1e-4)
    chk2 = pallas_sum_sq_err(x_hat, target, block_rows=8)
    assert jnp.allclose(chk2, jnp.sum((x_hat - target) ** 2), rtol=1e-5, atol=1e-4)
    jax.block_until_ready((chk1, chk2))

    # Larger, aligned, multi-block sanity check (hits the (2048,128) block path
    # once shapes grow; here it exercises multiple grid steps + core split).
    big = jax.random.uniform(jax.random.PRNGKey(7), (4, 64, 32, 32),
                             dtype=jnp.float32, minval=0.05, maxval=1.0)
    chk3 = pallas_sum_log(big, block_rows=64)
    assert jnp.allclose(chk3, jnp.sum(jnp.log(big)), rtol=1e-5, atol=1e-3)
    jax.block_until_ready(chk3)

    print("KERNEL_OK")
</pallas_src>

<mosaic_0001>
module attributes {stable_mosaic.version = 11 : i64} {
  func.func @kernel(%arg0: i32, %arg1: i32, %arg2: memref<12x128xf32, #tpu.memory_space<vmem>>, %arg3: memref<1x1x128xf32, #tpu.memory_space<vmem>>) attributes {dimension_semantics = [#tpu.dimension_semantics<parallel>, #tpu.dimension_semantics<arbitrary>], iteration_bounds = array<i64: 1, 1>, scalar_prefetch = 0 : i64, scratch_operands = 0 : i64, tpu.core_type = #tpu.core_type<tc>, window_params = [{transform_indices = @transform_0, window_bounds = array<i64: 12, 128>}, {transform_indices = @transform_1, window_bounds = array<i64: 1, 1, 128>}]} {
    %c0_i32 = arith.constant 0 : i32
    %0 = arith.cmpi eq, %arg1, %c0_i32 : i32
    %1 = arith.extui %0 : i1 to i32
    %c0_i32_0 = arith.constant 0 : i32
    %2 = arith.cmpi ne, %1, %c0_i32_0 : i32
    scf.if %2 {
      %cst_9 = arith.constant 0.000000e+00 : f32
      %25 = vector.broadcast %cst_9 : f32 to vector<1x1x128xf32>
      %c0_10 = arith.constant 0 : index
      %c0_11 = arith.constant 0 : index
      %c0_12 = arith.constant 0 : index
      %26 = vector.load %arg3[%c0_10, %c0_11, %c0_12] : memref<1x1x128xf32, #tpu.memory_space<vmem>>, vector<1x1x128xf32>
      tpu.vector_store %arg3[%c0_10, %c0_11, %c0_12], %25 {strides = array<i32>} : memref<1x1x128xf32, #tpu.memory_space<vmem>>, vector<1x1x128xf32>,
    } else {
    }
    %c0 = arith.constant 0 : index
    %c0_1 = arith.constant 0 : index
    %3 = vector.load %arg2[%c0, %c0_1] : memref<12x128xf32, #tpu.memory_space<vmem>>, vector<12x128xf32>
    %c1_i32 = arith.constant 1 : i32
    %4 = arith.muli %arg0, %c1_i32 : i32
    %5 = arith.addi %4, %arg1 : i32
    %c1536_i32 = arith.constant 1536 : i32
    %6 = arith.muli %5, %c1536_i32 : i32
    %7 = tpu.iota {dimensions = array<i32: 0>} : vector<12x128xi32>
    %8 = tpu.iota {dimensions = array<i32: 1>} : vector<12x128xi32>
    %c128_i32 = arith.constant 128 : i32
    %9 = vector.broadcast %c128_i32 : i32 to vector<12x128xi32>
    %10 = arith.muli %7, %9 : vector<12x128xi32>
    %11 = vector.broadcast %6 : i32 to vector<12x128xi32>
    %12 = arith.addi %11, %10 : vector<12x128xi32>
    %13 = arith.addi %12, %8 : vector<12x128xi32>
    %c1440_i32 = arith.constant 1440 : i32
    %14 = vector.broadcast %c1440_i32 : i32 to vector<12x128xi32>
    %15 = arith.cmpi slt, %13, %14 : vector<12x128xi32>
    %cst = arith.constant 1.000000e+00 : f32
    %16 = vector.broadcast %cst : f32 to vector<12x128xf32>
    %17 = arith.select %15, %3, %16 : vector<12x128xi1>, vector<12x128xf32>
    %18 = math.log %17 : vector<12x128xf32>
    %c0_2 = arith.constant 0 : index
    %c0_3 = arith.constant 0 : index
    %c0_4 = arith.constant 0 : index
    %19 = vector.load %arg3[%c0_2, %c0_3, %c0_4] : memref<1x1x128xf32, #tpu.memory_space<vmem>>, vector<1x1x128xf32>
    %cst_5 = arith.constant dense<0.000000e+00> : vector<128xf32>
    %20 = vector.multi_reduction <add>, %18, %cst_5 [0] : vector<12x128xf32> to vector<128xf32>
    %21 = vector.shape_cast %20 : vector<128xf32> to vector<1x128xf32>
    %22 = vector.shape_cast %21 : vector<1x128xf32> to vector<1x1x128xf32>
    %23 = arith.addf %19, %22 : vector<1x1x128xf32>
    %c0_6 = arith.constant 0 : index
    %c0_7 = arith.constant 0 : index
    %c0_8 = arith.constant 0 : index
    %24 = vector.load %arg3[%c0_6, %c0_7, %c0_8] : memref<1x1x128xf32, #tpu.memory_space<vmem>>, vector<1x1x128xf32>
    tpu.vector_store %arg3[%c0_6, %c0_7, %c0_8], %23 {strides = array<i32>} : memref<1x1x128xf32, #tpu.memory_space<vmem>>, vector<1x1x128xf32>,
    return
  }
  func.func @transform_0(%arg0: i32, %arg1: i32) -> (i32, i32) {
    %c1_i32 = arith.constant 1 : i32
    %0 = arith.muli %arg0, %c1_i32 : i32
    %1 = arith.addi %0, %arg1 : i32
    %c0_i32 = arith.constant 0 : i32
    %2 = arith.minsi %1, %c0_i32 : i32
    %c0_i32_0 = arith.constant 0 : i32
    %c0_i32_1 = arith.constant 0 : i32
    return %2, %c0_i32_0 : i32, i32
  }
  func.func @transform_1(%arg0: i32, %arg1: i32) -> (i32, i32, i32) {
    %c0_i32 = arith.constant 0 : i32
    %c0_i32_0 = arith.constant 0 : i32
    %c0_i32_1 = arith.constant 0 : i32
    return %arg0, %c0_i32, %c0_i32_0 : i32, i32, i32
  }
}

module attributes {stable_mosaic.version = 11 : i64} {
  func.func @kernel(%arg0: i32, %arg1: i32, %arg2: memref<32x128xf32, #tpu.memory_space<vmem>>, %arg3: memref<1x8x128xf32, #tpu.memory_space<vmem>>) attributes {dimension_semantics = [#tpu.dimension_semantics<parallel>, #tpu.dimension_semantics<arbitrary>], iteration_bounds = array<i64: 1, 1>, scalar_prefetch = 0 : i64, scratch_operands = 0 : i64, tpu.core_type = #tpu.core_type<tc>, window_params = [{transform_indices = @transform_0, window_bounds = array<i64: 32, 128>}, {transform_indices = @transform_1, window_bounds = array<i64: 1, 8, 128>}]} {
    %c0_i32 = arith.constant 0 : i32
    %0 = arith.cmpi eq, %arg1, %c0_i32 : i32
    %1 = arith.extui %0 : i1 to i32
    %c0_i32_0 = arith.constant 0 : i32
    %2 = arith.cmpi ne, %1, %c0_i32_0 : i32
    scf.if %2 {
      %cst_8 = arith.constant 0.000000e+00 : f32
      %11 = vector.broadcast %cst_8 : f32 to vector<1x8x128xf32>
      %c0_9 = arith.constant 0 : index
      %c0_10 = arith.constant 0 : index
      %c0_11 = arith.constant 0 : index
      %12 = vector.load %arg3[%c0_9, %c0_10, %c0_11] : memref<1x8x128xf32, #tpu.memory_space<vmem>>, vector<1x8x128xf32>
      tpu.vector_store %arg3[%c0_9, %c0_10, %c0_11], %11 {strides = array<i32>} : memref<1x8x128xf32, #tpu.memory_space<vmem>>, vector<1x8x128xf32>,
    } else {
    }
    %c0 = arith.constant 0 : index
    %c0_1 = arith.constant 0 : index
    %3 = vector.load %arg2[%c0, %c0_1] : memref<32x128xf32, #tpu.memory_space<vmem>>, vector<32x128xf32>
    %4 = math.log %3 : vector<32x128xf32>
    %c0_2 = arith.constant 0 : index
    %c0_3 = arith.constant 0 : index
    %c0_4 = arith.constant 0 : index
    %5 = vector.load %arg3[%c0_2, %c0_3, %c0_4] : memref<1x8x128xf32, #tpu.memory_space<vmem>>, vector<1x8x128xf32>
    %6 = vector.shape_cast %4 : vector<32x128xf32> to vector<4x8x128xf32>
    %cst = arith.constant dense<0.000000e+00> : vector<8x128xf32>
    %7 = vector.multi_reduction <add>, %6, %cst [0] : vector<4x8x128xf32> to vector<8x128xf32>
    %8 = vector.shape_cast %7 : vector<8x128xf32> to vector<1x8x128xf32>
    %9 = arith.addf %5, %8 : vector<1x8x128xf32>
    %c0_5 = arith.constant 0 : index
    %c0_6 = arith.constant 0 : index
    %c0_7 = arith.constant 0 : index
    %10 = vector.load %arg3[%c0_5, %c0_6, %c0_7] : memref<1x8x128xf32, #tpu.memory_space<vmem>>, vector<1x8x128xf32>
    tpu.vector_store %arg3[%c0_5, %c0_6, %c0_7], %9 {strides = array<i32>} : memref<1x8x128xf32, #tpu.memory_space<vmem>>, vector<1x8x128xf32>,
    return
  }
  func.func @transform_0(%arg0: i32, %arg1: i32) -> (i32, i32) {
    %c1_i32 = arith.constant 1 : i32
    %0 = arith.muli %arg0, %c1_i32 : i32
    %1 = arith.addi %0, %arg1 : i32
    %c0_i32 = arith.constant 0 : i32
    %2 = arith.minsi %1, %c0_i32 : i32
    %c0_i32_0 = arith.constant 0 : i32
    %c0_i32_1 = arith.constant 0 : i32
    return %2, %c0_i32_0 : i32, i32
  }
  func.func @transform_1(%arg0: i32, %arg1: i32) -> (i32, i32, i32) {
    %c0_i32 = arith.constant 0 : i32
    %c0_i32_0 = arith.constant 0 : i32
    %c0_i32_1 = arith.constant 0 : i32
    return %arg0, %c0_i32, %c0_i32_0 : i32, i32, i32
  }
}

module attributes {stable_mosaic.version = 11 : i64} {
  func.func @kernel(%arg0: i32, %arg1: i32, %arg2: memref<16x128xf32, #tpu.memory_space<vmem>>, %arg3: memref<16x128xf32, #tpu.memory_space<vmem>>, %arg4: memref<1x8x128xf32, #tpu.memory_space<vmem>>) attributes {dimension_semantics = [#tpu.dimension_semantics<parallel>, #tpu.dimension_semantics<arbitrary>], iteration_bounds = array<i64: 1, 1>, scalar_prefetch = 0 : i64, scratch_operands = 0 : i64, tpu.core_type = #tpu.core_type<tc>, window_params = [{transform_indices = @transform_0, window_bounds = array<i64: 16, 128>}, {transform_indices = @transform_1, window_bounds = array<i64: 16, 128>}, {transform_indices = @transform_2, window_bounds = array<i64: 1, 8, 128>}]} {
    %c0_i32 = arith.constant 0 : i32
    %0 = arith.cmpi eq, %arg1, %c0_i32 : i32
    %1 = arith.extui %0 : i1 to i32
    %c0_i32_0 = arith.constant 0 : i32
    %2 = arith.cmpi ne, %1, %c0_i32_0 : i32
    scf.if %2 {
      %cst_11 = arith.constant 0.000000e+00 : f32
      %27 = vector.broadcast %cst_11 : f32 to vector<1x8x128xf32>
      %c0_12 = arith.constant 0 : index
      %c0_13 = arith.constant 0 : index
      %c0_14 = arith.constant 0 : index
      %28 = vector.load %arg4[%c0_12, %c0_13, %c0_14] : memref<1x8x128xf32, #tpu.memory_space<vmem>>, vector<1x8x128xf32>
      tpu.vector_store %arg4[%c0_12, %c0_13, %c0_14], %27 {strides = array<i32>} : memref<1x8x128xf32, #tpu.memory_space<vmem>>, vector<1x8x128xf32>,
    } else {
    }
    %c0 = arith.constant 0 : index
    %c0_1 = arith.constant 0 : index
    %3 = vector.load %arg2[%c0, %c0_1] : memref<16x128xf32, #tpu.memory_space<vmem>>, vector<16x128xf32>
    %c0_2 = arith.constant 0 : index
    %c0_3 = arith.constant 0 : index
    %4 = vector.load %arg3[%c0_2, %c0_3] : memref<16x128xf32, #tpu.memory_space<vmem>>, vector<16x128xf32>
    %c1_i32 = arith.constant 1 : i32
    %5 = arith.muli %arg0, %c1_i32 : i32
    %6 = arith.addi %5, %arg1 : i32
    %c2048_i32 = arith.constant 2048 : i32
    %7 = arith.muli %6, %c2048_i32 : i32
    %8 = tpu.iota {dimensions = array<i32: 0>} : vector<16x128xi32>
    %9 = tpu.iota {dimensions = array<i32: 1>} : vector<16x128xi32>
    %c128_i32 = arith.constant 128 : i32
    %10 = vector.broadcast %c128_i32 : i32 to vector<16x128xi32>
    %11 = arith.muli %8, %10 : vector<16x128xi32>
    %12 = vector.broadcast %7 : i32 to vector<16x128xi32>
    %13 = arith.addi %12, %11 : vector<16x128xi32>
    %14 = arith.addi %13, %9 : vector<16x128xi32>
    %c1944_i32 = arith.constant 1944 : i32
    %15 = vector.broadcast %c1944_i32 : i32 to vector<16x128xi32>
    %16 = arith.cmpi slt, %14, %15 : vector<16x128xi32>
    %17 = arith.subf %3, %4 : vector<16x128xf32>
    %cst = arith.constant 0.000000e+00 : f32
    %18 = vector.broadcast %cst : f32 to vector<16x128xf32>
    %19 = arith.select %16, %17, %18 : vector<16x128xi1>, vector<16x128xf32>
    %20 = arith.mulf %19, %19 : vector<16x128xf32>
    %c0_4 = arith.constant 0 : index
    %c0_5 = arith.constant 0 : index
    %c0_6 = arith.constant 0 : index
    %21 = vector.load %arg4[%c0_4, %c0_5, %c0_6] : memref<1x8x128xf32, #tpu.memory_space<vmem>>, vector<1x8x128xf32>
    %22 = vector.shape_cast %20 : vector<16x128xf32> to vector<2x8x128xf32>
    %cst_7 = arith.constant dense<0.000000e+00> : vector<8x128xf32>
    %23 = vector.multi_reduction <add>, %22, %cst_7 [0] : vector<2x8x128xf32> to vector<8x128xf32>
    %24 = vector.shape_cast %23 : vector<8x128xf32> to vector<1x8x128xf32>
    %25 = arith.addf %21, %24 : vector<1x8x128xf32>
    %c0_8 = arith.constant 0 : index
    %c0_9 = arith.constant 0 : index
    %c0_10 = arith.constant 0 : index
    %26 = vector.load %arg4[%c0_8, %c0_9, %c0_10] : memref<1x8x128xf32, #tpu.memory_space<vmem>>, vector<1x8x128xf32>
    tpu.vector_store %arg4[%c0_8, %c0_9, %c0_10], %25 {strides = array<i32>} : memref<1x8x128xf32, #tpu.memory_space<vmem>>, vector<1x8x128xf32>,
    return
  }
  func.func @transform_0(%arg0: i32, %arg1: i32) -> (i32, i32) {
    %c1_i32 = arith.constant 1 : i32
    %0 = arith.muli %arg0, %c1_i32 : i32
    %1 = arith.addi %0, %arg1 : i32
    %c0_i32 = arith.constant 0 : i32
    %2 = arith.minsi %1, %c0_i32 : i32
    %c0_i32_0 = arith.constant 0 : i32
    %c0_i32_1 = arith.constant 0 : i32
    return %2, %c0_i32_0 : i32, i32
  }
  func.func @transform_1(%arg0: i32, %arg1: i32) -> (i32, i32) {
    %c1_i32 = arith.constant 1 : i32
    %0 = arith.muli %arg0, %c1_i32 : i32
    %1 = arith.addi %0, %arg1 : i32
    %c0_i32 = arith.constant 0 : i32
    %2 = arith.minsi %1, %c0_i32 : i32
    %c0_i32_0 = arith.constant 0 : i32
    %c0_i32_1 = arith.constant 0 : i32
    return %2, %c0_i32_0 : i32, i32
  }
  func.func @transform_2(%arg0: i32, %arg1: i32) -> (i32, i32, i32) {
    %c0_i32 = arith.constant 0 : i32
    %c0_i32_0 = arith.constant 0 : i32
    %c0_i32_1 = arith.constant 0 : i32
    return %arg0, %c0_i32, %c0_i32_0 : i32, i32, i32
  }
}

</mosaic_0001>

<llo_original>
// kernel: _rate_distortion_loss_p2.3
$region0: #{_rate_distortion_loss_p2.3}
  #allocation0 [shape = 'u32[]', space=smem, size = 0x4, offset = 0x4, fixed_abs, tag = 'smem constant byte address 0x4 - core index']
  #allocation1 [shape = 'u32[144,128]{1,0:T(1,128)}', space=vmem, size = 0x12000, scoped, tag = 'internal scratch']
  %s0 = inlined_call_operand.vmem [shape: f32[12,128], index: 0, kind: input, shape index: {}]
  %s1 = inlined_call_operand.vmem [shape: f32[1,1,128], index: 1, kind: output, shape index: {}]
  %s2 = sld [smem:[#allocation0]]
  $region18: #{_rate_distortion_loss_p2.3} parent=0
    _
  %s4 = ssub.s32 1, %s2
  %s5 = scalar_select 0, %s4, %s2
  // Predicated region
  $region2: #{_rate_distortion_loss_p2.3} parent=0 // pred_check
    _
  $region3: #{_rate_distortion_loss_p2.3} parent=0 // pred_check_branch
    %7 = sbr.rel (0) target = $region5
  $region4: #{_rate_distortion_loss_p2.3} parent=0 // pred_region
    %s8 = sadd.s32 0, 0
    %p9 = scmp.lt.s32.totalorder %s8, 0
    %s10 = scalar_select %p9, %s8, 0
    %s11 = smul.u32 2, %s10
    %p12 = scmp.lt.s32.totalorder %s11, 1
    %s13 = scalar_select %p12, %s11, 1
    %s14 = smul.addr %s13, 8
    %s15 = scalar_lea.vmem %s0, %s14
    %s16 = sadd.s32 0, 0
    %p17 = scmp.lt.s32.totalorder %s16, 0
    %s18 = scalar_select %p17, %s16, 0
    %s19 = smul.u32 2, %s18
  $region5: #{_rate_distortion_loss_p2.3} parent=0 // pred_fallthru
    _
  %s20 = sadd.s32 0, 0
  %p21 = scmp.lt.s32.totalorder %s20, 0
  %s22 = scalar_select %p21, %s20, 0
  %s23 = smul.u32 2, %s22
  %p24 = scmp.lt.s32.totalorder %s23, 1
  %s25 = scalar_select %p24, %s23, 1
  %s26 = smul.addr %s25, 8
  %s27 = scalar_lea.vmem %s0, %s26
  %s28 = sadd.s32 0, 0
  %p29 = scmp.lt.s32.totalorder %s28, 0
  %s30 = scalar_select %p29, %s28, 0
  %s31 = smul.u32 2, %s30
  %p32 = scmp.lt.s32.totalorder %s31, 1
  %s33 = scalar_select %p32, %s31, 1
  %s34 = smul.addr %s33, 8
  %s35 = scalar_lea.vmem %s0, %s34
  %s36 = sadd.s32 0, 0
  %p37 = scmp.lt.s32.totalorder %s36, 0
  %s38 = scalar_select %p37, %s36, 0
  %s39 = smul.u32 2, %s38
  %p40 = scmp.eq.s32.totalorder 0, 0
  // Predicated region
  $region6: #{_rate_distortion_loss_p2.3} parent=0 // pred_check
    %p41 = pneg %p40
  $region7: #{_rate_distortion_loss_p2.3} parent=0 // pred_check_branch
    %43 = sbr.rel (%p41) target = $region9
  $region8: #{_rate_distortion_loss_p2.3} parent=0 // pred_region
    %44 = vst [vmem:[%s1] sm:$0x1] 0.0
  $region9: #{_rate_distortion_loss_p2.3} parent=0 // pred_fallthru
    _
  %v45 = vld [vmem:[%s35] sm:$0xff]
  %v46 = vld [vmem:[%s35 + $0x8] sm:$0xf]
  %s47 = sadd.s32 0, 0
  %s48 = smul.u32 %s47, 1536
  %v49 = vlaneseq
  %v50 = vshrl.u32 %v49, 7
  %v51 = vadd.s32 %v50, 8
  %v52 = vlaneseq
  %v53 = vand.u32 %v52, 127
  %v54 = vmul.u32 %v50, 128
  %v55 = vmul.u32 %v51, 128
  %v56 = vstv %s48
  %v57 = vadd.s32 %v56, %v54
  %v58 = vadd.s32 %v56, %v55
  %v59 = vadd.s32 %v57, %v53
  %v60 = vadd.s32 %v58, %v53
  %vm61 = vcmp.lt.s32.totalorder %v59, 1440
  %vm62 = vcmp.lt.s32.totalorder %v60, 1440
  %v63 = vsel %vm61, %v45, 1.0
  %v64 = vsel %vm62, %v46, 1.0
  %v65 = vlog2.pop %v63
  %v66 = vmul.f32 %v65, 0.6931472
  %v67 = vlog2.pop %v64
  %v68 = vmul.f32 %v67, 0.6931472
  %v69 = vld [vmem:[%s1] sm:$0x1]
  %vm70 = vcmask 1043456
  %v71 = vsel %vm70, %v68, 0.0
  %v72 = vadd.f32 %v66, %v71
  %v73 = vrot.slane %v72, 4
  %v74 = vadd.f32 %v72, %v73
  %v75 = vrot.slane %v74, 2
  %v76 = vadd.f32 %v74, %v75
  %v77 = vrot.slane %v76, 1
  %v78 = vadd.f32 %v76, %v77
  %v79 = vadd.f32 %v69, %v78
  %80 = vst [vmem:[%s1] sm:$0x1] %v79
  // Predicated region
  $region10: #{_rate_distortion_loss_p2.3} parent=0 // pred_check
    _
  $region11: #{_rate_distortion_loss_p2.3} parent=0 // pred_check_branch
    %82 = sbr.rel (0) target = $region13
  $region12: #{_rate_distortion_loss_p2.3} parent=0 // pred_region
    _
  $region13: #{_rate_distortion_loss_p2.3} parent=0 // pred_fallthru
    _
  // Predicated region
  $region14: #{_rate_distortion_loss_p2.3} parent=0 // pred_check
    _
  $region15: #{_rate_distortion_loss_p2.3} parent=0 // pred_check_branch
    %84 = sbr.rel (0) target = $region17
  $region16: #{_rate_distortion_loss_p2.3} parent=0 // pred_region
    _
  $region17: #{_rate_distortion_loss_p2.3} parent=0 // pred_fallthru
    _

// kernel: _rate_distortion_loss_p2.4
$region0: #{_rate_distortion_loss_p2.4}
  #allocation0 [shape = 'u32[]', space=smem, size = 0x4, offset = 0x4, fixed_abs, tag = 'smem constant byte address 0x4 - core index']
  #allocation1 [shape = 'u32[144,128]{1,0:T(1,128)}', space=vmem, size = 0x12000, scoped, tag = 'internal scratch']
  %s0 = inlined_call_operand.vmem [shape: f32[32,128], index: 0, kind: input, shape index: {}]
  %s1 = inlined_call_operand.vmem [shape: f32[1,8,128], index: 1, kind: output, shape index: {}]
  %s2 = sld [smem:[#allocation0]]
  $region18: #{_rate_distortion_loss_p2.4} parent=0
    _
  %s4 = ssub.s32 1, %s2
  %s5 = scalar_select 0, %s4, %s2
  // Predicated region
  $region2: #{_rate_distortion_loss_p2.4} parent=0 // pred_check
    _
  $region3: #{_rate_distortion_loss_p2.4} parent=0 // pred_check_branch
    %7 = sbr.rel (0) target = $region5
  $region4: #{_rate_distortion_loss_p2.4} parent=0 // pred_region
    %s8 = sadd.s32 0, 0
    %p9 = scmp.lt.s32.totalorder %s8, 0
    %s10 = scalar_select %p9, %s8, 0
    %s11 = smul.u32 4, %s10
    %p12 = scmp.lt.s32.totalorder %s11, 3
    %s13 = scalar_select %p12, %s11, 3
    %s14 = smul.addr %s13, 8
    %s15 = scalar_lea.vmem %s0, %s14
    %s16 = sadd.s32 0, 0
    %p17 = scmp.lt.s32.totalorder %s16, 0
    %s18 = scalar_select %p17, %s16, 0
    %s19 = smul.u32 4, %s18
  $region5: #{_rate_distortion_loss_p2.4} parent=0 // pred_fallthru
    _
  %s20 = sadd.s32 0, 0
  %p21 = scmp.lt.s32.totalorder %s20, 0
  %s22 = scalar_select %p21, %s20, 0
  %s23 = smul.u32 4, %s22
  %p24 = scmp.lt.s32.totalorder %s23, 3
  %s25 = scalar_select %p24, %s23, 3
  %s26 = smul.addr %s25, 8
  %s27 = scalar_lea.vmem %s0, %s26
  %s28 = sadd.s32 0, 0
  %p29 = scmp.lt.s32.totalorder %s28, 0
  %s30 = scalar_select %p29, %s28, 0
  %s31 = smul.u32 4, %s30
  %p32 = scmp.lt.s32.totalorder %s31, 3
  %s33 = scalar_select %p32, %s31, 3
  %s34 = smul.addr %s33, 8
  %s35 = scalar_lea.vmem %s0, %s34
  %s36 = sadd.s32 0, 0
  %p37 = scmp.lt.s32.totalorder %s36, 0
  %s38 = scalar_select %p37, %s36, 0
  %s39 = smul.u32 4, %s38
  %p40 = scmp.eq.s32.totalorder 0, 0
  // Predicated region
  $region6: #{_rate_distortion_loss_p2.4} parent=0 // pred_check
    %p41 = pneg %p40
  $region7: #{_rate_distortion_loss_p2.4} parent=0 // pred_check_branch
    %43 = sbr.rel (%p41) target = $region9
  $region8: #{_rate_distortion_loss_p2.4} parent=0 // pred_region
    %44 = vst [vmem:[%s1] sm:$0xff] 0.0
  $region9: #{_rate_distortion_loss_p2.4} parent=0 // pred_fallthru
    _
  %v45 = vld [vmem:[%s35] sm:$0xff]
  %v46 = vld [vmem:[%s35 + $0x8] sm:$0xff]
  %v47 = vld [vmem:[%s35 + $0x10] sm:$0xff]
  %v48 = vld [vmem:[%s35 + $0x18] sm:$0xff]
  %v49 = vlog2.pop %v45
  %v50 = vmul.f32 %v49, 0.6931472
  %v51 = vlog2.pop %v46
  %v52 = vmul.f32 %v51, 0.6931472
  %v53 = vlog2.pop %v47
  %v54 = vmul.f32 %v53, 0.6931472
  %v55 = vlog2.pop %v48
  %v56 = vmul.f32 %v55, 0.6931472
  %v57 = vld [vmem:[%s1] sm:$0xff]
  %v58 = vadd.f32 %v50, %v52
  %v59 = vadd.f32 %v58, %v54
  %v60 = vadd.f32 %v59, %v56
  %v61 = vadd.f32 %v57, %v60
  %62 = vst [vmem:[%s1] sm:$0xff] %v61
  // Predicated region
  $region10: #{_rate_distortion_loss_p2.4} parent=0 // pred_check
    _
  $region11: #{_rate_distortion_loss_p2.4} parent=0 // pred_check_branch
    %64 = sbr.rel (0) target = $region13
  $region12: #{_rate_distortion_loss_p2.4} parent=0 // pred_region
    _
  $region13: #{_rate_distortion_loss_p2.4} parent=0 // pred_fallthru
    _
  // Predicated region
  $region14: #{_rate_distortion_loss_p2.4} parent=0 // pred_check
    _
  $region15: #{_rate_distortion_loss_p2.4} parent=0 // pred_check_branch
    %66 = sbr.rel (0) target = $region17
  $region16: #{_rate_distortion_loss_p2.4} parent=0 // pred_region
    _
  $region17: #{_rate_distortion_loss_p2.4} parent=0 // pred_fallthru
    _

// kernel: _rate_distortion_loss_p2.5
$region0: #{_rate_distortion_loss_p2.5}
  #allocation0 [shape = 'u32[]', space=smem, size = 0x4, offset = 0x4, fixed_abs, tag = 'smem constant byte address 0x4 - core index']
  #allocation1 [shape = 'u32[144,128]{1,0:T(1,128)}', space=vmem, size = 0x12000, scoped, tag = 'internal scratch']
  %s0 = inlined_call_operand.vmem [shape: f32[16,128], index: 0, kind: input, shape index: {}]
  %s1 = inlined_call_operand.vmem [shape: f32[16,128], index: 1, kind: input, shape index: {}]
  %s2 = inlined_call_operand.vmem [shape: f32[1,8,128], index: 2, kind: output, shape index: {}]
  %s3 = sld [smem:[#allocation0]]
  $region22: #{_rate_distortion_loss_p2.5} parent=0
    _
  %s5 = ssub.s32 1, %s3
  %s6 = scalar_select 0, %s5, %s3
  // Predicated region
  $region2: #{_rate_distortion_loss_p2.5} parent=0 // pred_check
    _
  $region3: #{_rate_distortion_loss_p2.5} parent=0 // pred_check_branch
    %8 = sbr.rel (0) target = $region5
  $region4: #{_rate_distortion_loss_p2.5} parent=0 // pred_region
    %s9 = sadd.s32 0, 0
    %p10 = scmp.lt.s32.totalorder %s9, 0
    %s11 = scalar_select %p10, %s9, 0
    %s12 = smul.u32 2, %s11
    %p13 = scmp.lt.s32.totalorder %s12, 1
    %s14 = scalar_select %p13, %s12, 1
    %s15 = smul.addr %s14, 8
    %s16 = scalar_lea.vmem %s0, %s15
    %s17 = sadd.s32 0, 0
    %p18 = scmp.lt.s32.totalorder %s17, 0
    %s19 = scalar_select %p18, %s17, 0
    %s20 = smul.u32 2, %s19
  $region5: #{_rate_distortion_loss_p2.5} parent=0 // pred_fallthru
    _
  // Predicated region
  $region6: #{_rate_distortion_loss_p2.5} parent=0 // pred_check
    _
  $region7: #{_rate_distortion_loss_p2.5} parent=0 // pred_check_branch
    %22 = sbr.rel (0) target = $region9
  $region8: #{_rate_distortion_loss_p2.5} parent=0 // pred_region
    %s23 = sadd.s32 0, 0
    %p24 = scmp.lt.s32.totalorder %s23, 0
    %s25 = scalar_select %p24, %s23, 0
    %s26 = smul.u32 2, %s25
    %p27 = scmp.lt.s32.totalorder %s26, 1
    %s28 = scalar_select %p27, %s26, 1
    %s29 = smul.addr %s28, 8
    %s30 = scalar_lea.vmem %s1, %s29
    %s31 = sadd.s32 0, 0
    %p32 = scmp.lt.s32.totalorder %s31, 0
    %s33 = scalar_select %p32, %s31, 0
    %s34 = smul.u32 2, %s33
  $region9: #{_rate_distortion_loss_p2.5} parent=0 // pred_fallthru
    _
  %s35 = sadd.s32 0, 0
  %p36 = scmp.lt.s32.totalorder %s35, 0
  %s37 = scalar_select %p36, %s35, 0
  %s38 = smul.u32 2, %s37
  %p39 = scmp.lt.s32.totalorder %s38, 1
  %s40 = scalar_select %p39, %s38, 1
  %s41 = smul.addr %s40, 8
  %s42 = scalar_lea.vmem %s0, %s41
  %s43 = sadd.s32 0, 0
  %p44 = scmp.lt.s32.totalorder %s43, 0
  %s45 = scalar_select %p44, %s43, 0
  %s46 = smul.u32 2, %s45
  %p47 = scmp.lt.s32.totalorder %s46, 1
  %s48 = scalar_select %p47, %s46, 1
  %s49 = smul.addr %s48, 8
  %s50 = scalar_lea.vmem %s1, %s49
  %s51 = sadd.s32 0, 0
  %p52 = scmp.lt.s32.totalorder %s51, 0
  %s53 = scalar_select %p52, %s51, 0
  %s54 = smul.u32 2, %s53
  %p55 = scmp.lt.s32.totalorder %s54, 1
  %s56 = scalar_select %p55, %s54, 1
  %s57 = smul.addr %s56, 8
  %s58 = scalar_lea.vmem %s0, %s57
  %s59 = sadd.s32 0, 0
  %p60 = scmp.lt.s32.totalorder %s59, 0
  %s61 = scalar_select %p60, %s59, 0
  %s62 = smul.u32 2, %s61
  %s63 = sadd.s32 0, 0
  %p64 = scmp.lt.s32.totalorder %s63, 0
  %s65 = scalar_select %p64, %s63, 0
  %s66 = smul.u32 2, %s65
  %p67 = scmp.lt.s32.totalorder %s66, 1
  %s68 = scalar_select %p67, %s66, 1
  %s69 = smul.addr %s68, 8
  %s70 = scalar_lea.vmem %s1, %s69
  %s71 = sadd.s32 0, 0
  %p72 = scmp.lt.s32.totalorder %s71, 0
  %s73 = scalar_select %p72, %s71, 0
  %s74 = smul.u32 2, %s73
  %p75 = scmp.eq.s32.totalorder 0, 0
  // Predicated region
  $region10: #{_rate_distortion_loss_p2.5} parent=0 // pred_check
    %p76 = pneg %p75
  $region11: #{_rate_distortion_loss_p2.5} parent=0 // pred_check_branch
    %78 = sbr.rel (%p76) target = $region13
  $region12: #{_rate_distortion_loss_p2.5} parent=0 // pred_region
    %79 = vst [vmem:[%s2] sm:$0xff] 0.0
  $region13: #{_rate_distortion_loss_p2.5} parent=0 // pred_fallthru
    _
  %v80 = vld [vmem:[%s58] sm:$0xff]
  %v81 = vld [vmem:[%s58 + $0x8] sm:$0xff]
  %v82 = vld [vmem:[%s70] sm:$0xff]
  %v83 = vld [vmem:[%s70 + $0x8] sm:$0xff]
  %s84 = sadd.s32 0, 0
  %s85 = smul.u32 %s84, 2048
  %v86 = vlaneseq
  %v87 = vshrl.u32 %v86, 7
  %v88 = vadd.s32 %v87, 8
  %v89 = vlaneseq
  %v90 = vand.u32 %v89, 127
  %v91 = vmul.u32 %v87, 128
  %v92 = vmul.u32 %v88, 128
  %v93 = vstv %s85
  %v94 = vadd.s32 %v93, %v91
  %v95 = vadd.s32 %v93, %v92
  %v96 = vadd.s32 %v94, %v90
  %v97 = vadd.s32 %v95, %v90
  %vm98 = vcmp.lt.s32.totalorder %v96, 1944
  %vm99 = vcmp.lt.s32.totalorder %v97, 1944
  %v100 = vsub.f32 %v80, %v82
  %v101 = vsub.f32 %v81, %v83
  %v102 = vsel %vm98, %v100, 0.0
  %v103 = vsel %vm99, %v101, 0.0
  %v104 = vmul.f32 %v102, %v102
  %v105 = vmul.f32 %v103, %v103
  %v106 = vld [vmem:[%s2] sm:$0xff]
  %v107 = vadd.f32 %v104, %v105
  %v108 = vadd.f32 %v106, %v107
  %109 = vst [vmem:[%s2] sm:$0xff] %v108
  // Predicated region
  $region14: #{_rate_distortion_loss_p2.5} parent=0 // pred_check
    _
  $region15: #{_rate_distortion_loss_p2.5} parent=0 // pred_check_branch
    %111 = sbr.rel (0) target = $region17
  $region16: #{_rate_distortion_loss_p2.5} parent=0 // pred_region
    _
  $region17: #{_rate_distortion_loss_p2.5} parent=0 // pred_fallthru
    _
  // Predicated region
  $region18: #{_rate_distortion_loss_p2.5} parent=0 // pred_check
    _
  $region19: #{_rate_distortion_loss_p2.5} parent=0 // pred_check_branch
    %113 = sbr.rel (0) target = $region21
  $region20: #{_rate_distortion_loss_p2.5} parent=0 // pred_region
    _
  $region21: #{_rate_distortion_loss_p2.5} parent=0 // pred_fallthru
    _

</llo_original>
